<compile_context>
chip_gen: v6e
topology: v6e:2x2x1
jax: 0.10.0
libtpu: 0.0.40
codegen_flags: <defaults>
</compile_context>

<pallas_src>
import jax
import jax.numpy as jnp
from jax.experimental import pallas as pl
from jax.experimental.pallas import tpu as pltpu


def _patch_embed_kernel(patches_ref, w_ref, pos_ref, out_ref):
    # patches_ref: (1, TILE_M, P)  bf16 (or f32)
    # w_ref:       (P, E)          bf16 (or f32)   -- resident across the grid
    # pos_ref:     (TILE_M, E)     f32 or bf16     -- resident across batch
    # out_ref:     (1, TILE_M, E)
    proj = jnp.dot(patches_ref[0], w_ref[...],
                   preferred_element_type=jnp.float32)       # MXU, f32 acc
    out_ref[0] = (proj + pos_ref[...]).astype(out_ref.dtype)


def patch_embedding(x, weight, bias, cls_token, pos_emb, *, patch_size,
                    tile_m=512, compute_dtype=jnp.bfloat16, out_dtype=None,
                    vmem_limit_bytes=None):
    """x: [B, C, H, W]. weight: [P, E] (already transposed from nn.Linear's
    (E, P) layout). Returns [B, N+1, E] in out_dtype (default: x.dtype)."""
    B, C, H, W = x.shape
    s = patch_size
    assert H % s == 0 and W % s == 0
    h, w = H // s, W // s
    N = h * w
    P = s * s * C
    E = weight.shape[1]
    assert weight.shape == (P, E)
    assert pos_emb.shape == (N + 1, E)
    M = N + 1  # cls row + N patch rows

    out_dtype = jnp.dtype(x.dtype if out_dtype is None else out_dtype)
    # Only demote the additive table when the output is also 16-bit.
    pos_dtype = out_dtype if out_dtype.itemsize <= 2 else jnp.float32

    # ---- layout glue (plain JAX) ------------------------------------------
    # Rearrange 'b c (h s1) (w s2) -> b (h w) (s1 s2 c)', cast to the MXU
    # compute dtype early (halves rearrange bandwidth), then prepend a zero
    # row per batch so the cls slot rides the same GEMM.  The 1-row pad is
    # kept on the (bf16) patches side rather than concatenating on the (f32)
    # output side: fewer bytes if it does materialize, and it may fuse.
    x_c = x.astype(compute_dtype)
    patches = x_c.reshape(B, C, h, s, w, s)
    patches = jnp.transpose(patches, (0, 2, 4, 3, 5, 1)).reshape(B, N, P)
    patches_aug = jnp.pad(patches, ((0, 0), (1, 0), (0, 0)))      # (B, M, P)

    # Fold bias + cls_token + positional embedding into one additive table.
    pos_aug = jnp.concatenate(
        [cls_token.reshape(1, E) + pos_emb[0:1, :],
         pos_emb[1:, :] + bias.reshape(1, E)],
        axis=0).astype(pos_dtype)                                 # (M, E)

    w_c = weight.astype(compute_dtype)

    # ---- tiling -------------------------------------------------------------
    if tile_m >= M:
        tm = M                              # full extent: always legal
    else:
        tm = max(8, (tile_m // 8) * 8)      # keep (8,128) constraint satisfied
    mt = pl.cdiv(M, tm)                     # ragged last tile -> masked stores

    cp_kwargs = dict(dimension_semantics=("parallel", "parallel"))
    if vmem_limit_bytes is not None:
        cp_kwargs["vmem_limit_bytes"] = vmem_limit_bytes

    out = pl.pallas_call(
        _patch_embed_kernel,
        out_shape=jax.ShapeDtypeStruct((B, M, E), out_dtype),
        grid_spec=pltpu.PrefetchScalarGridSpec(
            num_scalar_prefetch=0,
            # (mt, B): batch is the innermost loop, so W's and pos_aug's block
            # indices are constant across it and they are not re-DMA'd per b.
            grid=(mt, B),
            in_specs=[
                pl.BlockSpec((1, tm, P), lambda j, b: (b, j, 0)),
                pl.BlockSpec((P, E), lambda j, b: (0, 0)),
                pl.BlockSpec((tm, E), lambda j, b: (j, 0)),
            ],
            out_specs=pl.BlockSpec((1, tm, E), lambda j, b: (b, j, 0)),
        ),
        compiler_params=pltpu.CompilerParams(**cp_kwargs),
    )(patches_aug, w_c, pos_aug)
    return out


def _reference(x, weight, bias, cls_token, pos_emb, *, patch_size):
    B, C, H, W = x.shape
    s = patch_size
    h, w = H // s, W // s
    patches = x.reshape(B, C, h, s, w, s)
    patches = jnp.transpose(patches, (0, 2, 4, 3, 5, 1)).reshape(B, h * w, -1)
    proj = patches @ weight + bias
    cls = jnp.broadcast_to(cls_token.reshape(1, 1, -1), (B, 1, weight.shape[1]))
    out = jnp.concatenate([cls, proj], axis=1)
    return out + pos_emb[None, :, :]


if __name__ == "__main__":
    # Small shapes consistent with the module:
    #   in_channels=4, patch_size=8, img_size=16, emb_size=32
    B, C, H = 2, 4, 16
    patch_size = 8
    emb_size = 32
    num_patches = (H // patch_size) ** 2          # 4
    patch_dim = patch_size * patch_size * C       # 256

    key = jax.random.PRNGKey(0)
    kx, kw, kb, kc, kp = jax.random.split(key, 5)

    x = jax.random.normal(kx, (B, C, H, H), dtype=jnp.float32)
    # nn.Linear(patch_dim, emb_size): weight stored as (P, E) so kernel does x @ W
    weight = jax.random.normal(kw, (patch_dim, emb_size), dtype=jnp.float32) * 0.02
    bias = jax.random.normal(kb, (emb_size,), dtype=jnp.float32) * 0.02
    cls_token = jax.random.normal(kc, (1, 1, emb_size), dtype=jnp.float32)
    pos_emb = jax.random.normal(kp, (num_patches + 1, emb_size), dtype=jnp.float32)

    ref = _reference(x, weight, bias, cls_token, pos_emb,
                     patch_size=patch_size)

    # Default path: f32 output (module semantics).
    out = patch_embedding(x, weight, bias, cls_token, pos_emb,
                          patch_size=patch_size)
    out = jax.block_until_ready(out)
    assert out.shape == (B, num_patches + 1, emb_size), out.shape
    # bf16 matmul operands with f32 accumulation -> bf16-level tolerance.
    assert jnp.allclose(out, ref, atol=2e-2, rtol=2e-2), \
        float(jnp.max(jnp.abs(out - ref)))

    # bf16-output path (bandwidth-optimized variant for bf16 consumers).
    out_bf16 = patch_embedding(x, weight, bias, cls_token, pos_emb,
                               patch_size=patch_size, out_dtype=jnp.bfloat16)
    out_bf16 = jax.block_until_ready(out_bf16)
    assert out_bf16.dtype == jnp.bfloat16
    assert jnp.allclose(out_bf16.astype(jnp.float32), ref, atol=4e-2, rtol=4e-2), \
        float(jnp.max(jnp.abs(out_bf16.astype(jnp.float32) - ref)))

    print("KERNEL_OK")
</pallas_src>

<mosaic_0001>
module attributes {stable_mosaic.version = 11 : i64} {
  func.func @_patch_embed_kernel(%arg0: i32, %arg1: i32, %arg2: memref<1x5x256xbf16, #tpu.memory_space<vmem>>, %arg3: memref<256x32xbf16, #tpu.memory_space<vmem>>, %arg4: memref<5x32xf32, #tpu.memory_space<vmem>>, %arg5: memref<1x5x32xf32, #tpu.memory_space<vmem>>) attributes {dimension_semantics = [#tpu.dimension_semantics<parallel>, #tpu.dimension_semantics<parallel>], iteration_bounds = array<i64: 1, 2>, scalar_prefetch = 0 : i64, scratch_operands = 0 : i64, tpu.core_type = #tpu.core_type<tc>, window_params = [{transform_indices = @transform_0, window_bounds = array<i64: 1, 5, 256>}, {pipeline_mode = #tpu.pipeline_mode<synchronous>, transform_indices = @transform_1, window_bounds = array<i64: 256, 32>}, {transform_indices = @transform_2, window_bounds = array<i64: 5, 32>}, {transform_indices = @transform_3, window_bounds = array<i64: 1, 5, 32>}]} {
    %c0 = arith.constant 0 : index
    %c0_0 = arith.constant 0 : index
    %c0_1 = arith.constant 0 : index
    %0 = vector.load %arg2[%c0, %c0_0, %c0_1] : memref<1x5x256xbf16, #tpu.memory_space<vmem>>, vector<1x5x256xbf16>
    %1 = vector.shape_cast %0 : vector<1x5x256xbf16> to vector<5x256xbf16>
    %c0_2 = arith.constant 0 : index
    %c0_3 = arith.constant 0 : index
    %2 = vector.load %arg3[%c0_2, %c0_3] : memref<256x32xbf16, #tpu.memory_space<vmem>>, vector<256x32xbf16>
    %cst = arith.constant dense<0.000000e+00> : vector<5x32xf32>
    %3 = tpu.matmul %1, %2, %cst {dimension_numbers = #tpu.dot_dimension_numbers<[1], [0], [0], [1], [0, 0, 1, 1], [], []>} : vector<5x256xbf16>, vector<256x32xbf16>, vector<5x32xf32> -> vector<5x32xf32>
    %c0_4 = arith.constant 0 : index
    %c0_5 = arith.constant 0 : index
    %4 = vector.load %arg4[%c0_4, %c0_5] : memref<5x32xf32, #tpu.memory_space<vmem>>, vector<5x32xf32>
    %5 = arith.addf %3, %4 : vector<5x32xf32>
    %c0_6 = arith.constant 0 : index
    %c0_7 = arith.constant 0 : index
    %c0_8 = arith.constant 0 : index
    %6 = vector.load %arg5[%c0_6, %c0_7, %c0_8] : memref<1x5x32xf32, #tpu.memory_space<vmem>>, vector<1x5x32xf32>
    %7 = vector.shape_cast %6 : vector<1x5x32xf32> to vector<5x32xf32>
    %8 = vector.shape_cast %5 : vector<5x32xf32> to vector<1x5x32xf32>
    tpu.vector_store %arg5[%c0_6, %c0_7, %c0_8], %8 {strides = array<i32>} : memref<1x5x32xf32, #tpu.memory_space<vmem>>, vector<1x5x32xf32>,
    return
  }
  func.func @transform_0(%arg0: i32, %arg1: i32) -> (i32, i32, i32) {
    %c0_i32 = arith.constant 0 : i32
    %c0_i32_0 = arith.constant 0 : i32
    return %arg1, %arg0, %c0_i32 : i32, i32, i32
  }
  func.func @transform_1(%arg0: i32, %arg1: i32) -> (i32, i32) {
    %c0_i32 = arith.constant 0 : i32
    %c0_i32_0 = arith.constant 0 : i32
    %c0_i32_1 = arith.constant 0 : i32
    return %c0_i32, %c0_i32_0 : i32, i32
  }
  func.func @transform_2(%arg0: i32, %arg1: i32) -> (i32, i32) {
    %c0_i32 = arith.constant 0 : i32
    %c0_i32_0 = arith.constant 0 : i32
    return %arg0, %c0_i32 : i32, i32
  }
  func.func @transform_3(%arg0: i32, %arg1: i32) -> (i32, i32, i32) {
    %c0_i32 = arith.constant 0 : i32
    %c0_i32_0 = arith.constant 0 : i32
    return %arg1, %arg0, %c0_i32 : i32, i32, i32
  }
}

</mosaic_0001>

<llo_original>
// kernel: tpu_custom_call.1
$region0: #{tpu_custom_call.1}
  #allocation0 [shape = 'u32[]', space=smem, size = 0x4, offset = 0x4, fixed_abs, tag = 'smem constant byte address 0x4 - core index']
  #allocation1 [shape = 'u32[144,128]{1,0:T(1,128)}', space=vmem, size = 0x12000, scoped, tag = 'internal scratch']
  %s0 = inlined_call_operand.vmem [shape: bf16[2,5,256], index: 0, kind: input, shape index: {}]
  %s1 = inlined_call_operand.vmem [shape: bf16[256,32], index: 1, kind: input, shape index: {}]
  %s2 = inlined_call_operand.vmem [shape: f32[5,32], index: 2, kind: input, shape index: {}]
  %s3 = inlined_call_operand.vmem [shape: f32[2,5,32], index: 3, kind: output, shape index: {}]
  %s4 = sld [smem:[#allocation0]]
  $region45: #{tpu_custom_call.1} parent=0
    _
  %s6 = ssub.s32 1, %s4
  %s7 = scalar_select 0, %s6, %s4
  loop: start=0, step=1, limit=4
  $region2: #{tpu_custom_call.1} parent=0 // loop_pre_header
    _
  $region3: #{tpu_custom_call.1} parent=0 // loop_header
    %s9 = sphi 0, %s13
    %p10 = scmp.ge.s32.totalorder %s9, 4
    %s16 = sphi 0, %s28
    %s17 = sphi 0, %s24
    %s18 = sphi 0, %s16
    %s19 = sphi 0, %s17
    %s20 = sphi 0, %s18
    %s21 = sphi 0, %s19
    %s33 = sphi 0, %s35
    %s36 = sphi 0, %s33
    %s37 = sphi 0, %s36
    %s53 = sphi 0, %s37
    %s57 = sphi 0, %s57
    %s59 = sphi 0, %s57
    %s60 = sphi 0, %s59
    %s74 = sphi 0, %s60
    %s80 = sphi 0, %s82
    %s83 = sphi 0, %s80
    %s84 = sphi 0, %s83
    %s100 = sphi 0, %s84
    %s108 = sphi 0, %s110
    %s111 = sphi 0, %s108
    %s112 = sphi 0, %s111
    %s128 = sphi 0, %s112
  $region4: #{tpu_custom_call.1} parent=0 // loop_header_branch
    %12 = sbr.rel (%p10) target = $region8
  $region5: #{tpu_custom_call.1} parent=0 // loop_body
    %s14 = ssub.s32 %s9, 1
    %s15 = ssub.s32 %s9, 2
    %s22 = sadd.s32 1, %s17
    %p23 = scmp.ge.s32.totalorder %s22, 2
    %s24 = scalar_select %p23, 0, %s22
    %s25 = sadd.s32 1, %s16
    %s26 = scalar_select %p23, %s25, %s16
    %p27 = scmp.ge.s32.totalorder %s26, 1
    %s28 = scalar_select %p27, 0, %s26
    %s29 = ssub.s32 %s17, %s24
    %s30 = ssub.s32 %s16, %s28
    %s31 = sor.u32 %s29, %s30
    %p32 = scmp.eq.s32.totalorder %s31, 0
    %s34 = sadd.s32 %s33, 1
    %s35 = scalar_select %p32, %s33, %s34
    %p38 = pneg %p32
    %p39 = scmp.eq.s32.totalorder %s9, 1
    %p40 = por %p38, %p39
    %p41 = scmp.ne.s32.totalorder %s33, %s36
    %p42 = scmp.eq.s32.totalorder %s9, 0
    %p43 = por %p41, %p42
    %p44 = scmp.ne.s32.totalorder %s33, %s36
    %p45 = scmp.eq.s32.totalorder %s14, 1
    %p46 = por %p44, %p45
    %p47 = scmp.ne.s32.totalorder %s36, %s37
    %p48 = scmp.eq.s32.totalorder %s14, 0
    %p49 = por %p47, %p48
    %p50 = scmp.ne.s32.totalorder %s36, %s37
    %p51 = scmp.eq.s32.totalorder %s15, 1
    %p52 = por %p50, %p51
    %p54 = scmp.ne.s32.totalorder %s37, %s53
    %p55 = scmp.eq.s32.totalorder %s15, 0
    %p56 = por %p54, %p55
    %s58 = sadd.s32 %s57, 1
    %p61 = scmp.eq.s32.totalorder %s9, 1
    %p62 = scmp.ne.s32.totalorder %s57, %s59
    %p63 = scmp.eq.s32.totalorder %s9, 0
    %p64 = por %p62, %p63
    %p65 = scmp.ne.s32.totalorder %s57, %s59
    %p66 = scmp.eq.s32.totalorder %s14, 1
    %p67 = por %p65, %p66
    %p68 = scmp.ne.s32.totalorder %s59, %s60
    %p69 = scmp.eq.s32.totalorder %s14, 0
    %p70 = por %p68, %p69
    %p71 = scmp.ne.s32.totalorder %s59, %s60
    %p72 = scmp.eq.s32.totalorder %s15, 1
    %p73 = por %p71, %p72
    %p75 = scmp.ne.s32.totalorder %s60, %s74
    %p76 = scmp.eq.s32.totalorder %s15, 0
    %p77 = por %p75, %p76
    %s78 = ssub.s32 %s16, %s28
    %p79 = scmp.eq.s32.totalorder %s78, 0
    %s81 = sadd.s32 %s80, 1
    %s82 = scalar_select %p79, %s80, %s81
    %p85 = pneg %p79
    %p86 = scmp.eq.s32.totalorder %s9, 1
    %p87 = por %p85, %p86
    %p88 = scmp.ne.s32.totalorder %s80, %s83
    %p89 = scmp.eq.s32.totalorder %s9, 0
    %p90 = por %p88, %p89
    %p91 = scmp.ne.s32.totalorder %s80, %s83
    %p92 = scmp.eq.s32.totalorder %s14, 1
    %p93 = por %p91, %p92
    %p94 = scmp.ne.s32.totalorder %s83, %s84
    %p95 = scmp.eq.s32.totalorder %s14, 0
    %p96 = por %p94, %p95
    %p97 = scmp.ne.s32.totalorder %s83, %s84
    %p98 = scmp.eq.s32.totalorder %s15, 1
    %p99 = por %p97, %p98
    %p101 = scmp.ne.s32.totalorder %s84, %s100
    %p102 = scmp.eq.s32.totalorder %s15, 0
    %p103 = por %p101, %p102
    %s104 = ssub.s32 %s17, %s24
    %s105 = ssub.s32 %s16, %s28
    %s106 = sor.u32 %s104, %s105
    %p107 = scmp.eq.s32.totalorder %s106, 0
    %s109 = sadd.s32 %s108, 1
    %s110 = scalar_select %p107, %s108, %s109
    %p113 = pneg %p107
    %p114 = scmp.eq.s32.totalorder %s9, 1
    %p115 = por %p113, %p114
    %p116 = scmp.ne.s32.totalorder %s108, %s111
    %p117 = scmp.eq.s32.totalorder %s9, 0
    %p118 = por %p116, %p117
    %p119 = scmp.ne.s32.totalorder %s108, %s111
    %p120 = scmp.eq.s32.totalorder %s14, 1
    %p121 = por %p119, %p120
    %p122 = scmp.ne.s32.totalorder %s111, %s112
    %p123 = scmp.eq.s32.totalorder %s14, 0
    %p124 = por %p122, %p123
    %p125 = scmp.ne.s32.totalorder %s111, %s112
    %p126 = scmp.eq.s32.totalorder %s15, 1
    %p127 = por %p125, %p126
    %p129 = scmp.ne.s32.totalorder %s112, %s128
    %p130 = scmp.eq.s32.totalorder %s15, 0
    %p131 = por %p129, %p130
    %p132 = scmp.le.s32.totalorder 1, %s9
    %p133 = scmp.lt.s32.totalorder %s9, 3
    %p134 = pnand %p132, %p133
    %p135 = pneg %p134
    // Predicated region
    $region9: #{tpu_custom_call.1} parent=5 // pred_check
      _
    $region10: #{tpu_custom_call.1} parent=5 // pred_check_branch
      %137 = sbr.rel (%p134) target = $region12
    $region11: #{tpu_custom_call.1} parent=5 // pred_region
      %s138 = ssub.s32 %s9, 1
      // Predicated region
      $region13: #{tpu_custom_call.1} parent=11 // pred_check
        %p139 = pneg %p70
      $region14: #{tpu_custom_call.1} parent=11 // pred_check_branch
        %141 = sbr.rel (%p139) target = $region16
      $region15: #{tpu_custom_call.1} parent=11 // pred_region
        _
      $region16: #{tpu_custom_call.1} parent=11 // pred_fallthru
        _
      // Predicated region
      $region17: #{tpu_custom_call.1} parent=11 // pred_check
        %p142 = pneg %p96
      $region18: #{tpu_custom_call.1} parent=11 // pred_check_branch
        %144 = sbr.rel (%p142) target = $region20
      $region19: #{tpu_custom_call.1} parent=11 // pred_region
        %p145 = scmp.lt.s32.totalorder %s18, 0
        %s146 = scalar_select %p145, %s18, 0
        %s147 = smul.addr %s146, 8
        %s148 = scalar_lea.vmem %s2, %s147
      $region20: #{tpu_custom_call.1} parent=11 // pred_fallthru
        _
    $region12: #{tpu_custom_call.1} parent=5 // pred_fallthru
      _
    %p149 = scmp.lt.s32.totalorder %s9, 2
    // Predicated region
    $region21: #{tpu_custom_call.1} parent=5 // pred_check
      %p150 = pneg %p149
    $region22: #{tpu_custom_call.1} parent=5 // pred_check_branch
      %152 = sbr.rel (%p150) target = $region24
    $region23: #{tpu_custom_call.1} parent=5 // pred_region
      // Predicated region
      $region25: #{tpu_custom_call.1} parent=23 // pred_check
        %p153 = pneg %p43
      $region26: #{tpu_custom_call.1} parent=23 // pred_check_branch
        %155 = sbr.rel (%p153) target = $region28
      $region27: #{tpu_custom_call.1} parent=23 // pred_region
        %p156 = scmp.lt.s32.totalorder %s17, 1
        %s157 = scalar_select %p156, %s17, 1
        %p158 = scmp.lt.s32.totalorder %s16, 0
        %s159 = scalar_select %p158, %s16, 0
        %s160 = smul.addr %s159, 2
        %s161 = smul.addr %s157, 2
        %s162 = sadd.s32 %s160, %s161
        %s163 = smul.addr %s162, 4
        %s164 = scalar_lea.vmem %s0, %s163
      $region28: #{tpu_custom_call.1} parent=23 // pred_fallthru
        _
    $region24: #{tpu_custom_call.1} parent=5 // pred_fallthru
      _
    %p165 = scmp.le.s32.totalorder 1, %s9
    %p166 = scmp.lt.s32.totalorder %s9, 3
    %p167 = pnand %p165, %p166
    %p168 = pneg %p167
    // Predicated region
    $region29: #{tpu_custom_call.1} parent=5 // pred_check
      _
    $region30: #{tpu_custom_call.1} parent=5 // pred_check_branch
      %170 = sbr.rel (%p167) target = $region32
    $region31: #{tpu_custom_call.1} parent=5 // pred_region
      %s171 = ssub.s32 %s9, 1
      %p172 = scmp.lt.s32.totalorder %s19, 1
      %s173 = scalar_select %p172, %s19, 1
      %p174 = scmp.lt.s32.totalorder %s18, 0
      %s175 = scalar_select %p174, %s18, 0
      %s176 = smul.addr %s175, 2
      %s177 = smul.addr %s173, 2
      %s178 = sadd.s32 %s176, %s177
      %s179 = smul.addr %s178, 4
      %s180 = scalar_lea.vmem %s0, %s179
      %p181 = pneg %p49
      %p182 = pneg %p46
      %p183 = pneg %p70
      %p184 = pneg %p67
      %p185 = scmp.lt.s32.totalorder %s18, 0
      %s186 = scalar_select %p185, %s18, 0
      %s187 = smul.addr %s186, 8
      %s188 = scalar_lea.vmem %s2, %s187
      %p189 = pneg %p96
      %p190 = pneg %p93
      %p191 = pneg %p124
      %p192 = pneg %p121
      %p193 = scmp.lt.s32.totalorder %s19, 1
      %s194 = scalar_select %p193, %s19, 1
      %p195 = scmp.lt.s32.totalorder %s18, 0
      %s196 = scalar_select %p195, %s18, 0
      %s197 = sadd.s32 %s196, %s194
      %s198 = smul.addr %s197, 8
      %s199 = scalar_lea.vmem %s3, %s198
      %p200 = scmp.lt.s32.totalorder %s19, 1
      %s201 = scalar_select %p200, %s19, 1
      %p202 = scmp.lt.s32.totalorder %s18, 0
      %s203 = scalar_select %p202, %s18, 0
      %s204 = smul.addr %s203, 2
      %s205 = smul.addr %s201, 2
      %s206 = sadd.s32 %s204, %s205
      %s207 = smul.addr %s206, 4
      %s208 = scalar_lea.vmem %s0, %s207
      %p209 = scmp.lt.s32.totalorder %s18, 0
      %s210 = scalar_select %p209, %s18, 0
      %s211 = smul.addr %s210, 8
      %s212 = scalar_lea.vmem %s2, %s211
      %p213 = scmp.lt.s32.totalorder %s19, 1
      %s214 = scalar_select %p213, %s19, 1
      %p215 = scmp.lt.s32.totalorder %s18, 0
      %s216 = scalar_select %p215, %s18, 0
      %s217 = sadd.s32 %s216, %s214
      %s218 = smul.addr %s217, 8
      %s219 = scalar_lea.vmem %s3, %s218
      %v221 = vld [vmem:[%s208] sm:$0x77]
      %v222 = vld [vmem:[%s1] sm:$0xf]
      %v223 = vld [vmem:[%s1 + $0x4] sm:$0xf]
      %v224 = vld [vmem:[%s1 + $0x8] sm:$0xf]
      %v225 = vld [vmem:[%s1 + $0xc] sm:$0xf]
      %v226 = vld [vmem:[%s1 + $0x10] sm:$0xf]
      %v227 = vld [vmem:[%s1 + $0x14] sm:$0xf]
      %v228 = vld [vmem:[%s1 + $0x18] sm:$0xf]
      %v229 = vld [vmem:[%s1 + $0x1c] sm:$0xf]
      %v230 = vld [vmem:[%s1 + $0x20] sm:$0xf]
      %v231 = vld [vmem:[%s1 + $0x24] sm:$0xf]
      %v232 = vld [vmem:[%s1 + $0x28] sm:$0xf]
      %v233 = vld [vmem:[%s1 + $0x2c] sm:$0xf]
      %v234 = vld [vmem:[%s1 + $0x30] sm:$0xf]
      %v235 = vld [vmem:[%s1 + $0x34] sm:$0xf]
      %v236 = vld [vmem:[%s1 + $0x38] sm:$0xf]
      %v237 = vld [vmem:[%s1 + $0x3c] sm:$0xf]
      %v238 = vld [vmem:[%s1 + $0x40] sm:$0xf]
      %v239 = vld [vmem:[%s1 + $0x44] sm:$0xf]
      %v240 = vld [vmem:[%s1 + $0x48] sm:$0xf]
      %v241 = vld [vmem:[%s1 + $0x4c] sm:$0xf]
      %v242 = vld [vmem:[%s1 + $0x50] sm:$0xf]
      %v243 = vld [vmem:[%s1 + $0x54] sm:$0xf]
      %v244 = vld [vmem:[%s1 + $0x58] sm:$0xf]
      %v245 = vld [vmem:[%s1 + $0x5c] sm:$0xf]
      %v246 = vld [vmem:[%s1 + $0x60] sm:$0xf]
      %v247 = vld [vmem:[%s1 + $0x64] sm:$0xf]
      %v248 = vld [vmem:[%s1 + $0x68] sm:$0xf]
      %v249 = vld [vmem:[%s1 + $0x6c] sm:$0xf]
      %v250 = vld [vmem:[%s1 + $0x70] sm:$0xf]
      %v251 = vld [vmem:[%s1 + $0x74] sm:$0xf]
      %v252 = vld [vmem:[%s1 + $0x78] sm:$0xf]
      %v253 = vld [vmem:[%s1 + $0x7c] sm:$0xf]
      %v254 = vld [vmem:[%s212] sm:$0x1f]
      %v256 = vunpack.c.l.b16 %v221
      %v257 = vunpack.c.h.b16 %v221
      %v258 = vpack.c.b16 %v256, %v256
      %v259 = vpack.c.b16 %v257, %v257
      %v294 = vunpack.c.l.b16 %v222
      %v295 = vunpack.c.l.b16 %v223
      %v296 = vunpack.c.l.b16 %v224
      %v297 = vunpack.c.l.b16 %v225
      %v298 = vunpack.c.l.b16 %v226
      %v299 = vunpack.c.l.b16 %v227
      %v300 = vunpack.c.l.b16 %v228
      %v301 = vunpack.c.l.b16 %v229
      %v302 = vunpack.c.l.b16 %v230
      %v303 = vunpack.c.l.b16 %v231
      %v304 = vunpack.c.l.b16 %v232
      %v305 = vunpack.c.l.b16 %v233
      %v306 = vunpack.c.l.b16 %v234
      %v307 = vunpack.c.l.b16 %v235
      %v308 = vunpack.c.l.b16 %v236
      %v309 = vunpack.c.l.b16 %v237
      %v310 = vunpack.c.l.b16 %v238
      %v311 = vunpack.c.l.b16 %v239
      %v312 = vunpack.c.l.b16 %v240
      %v313 = vunpack.c.l.b16 %v241
      %v314 = vunpack.c.l.b16 %v242
      %v315 = vunpack.c.l.b16 %v243
      %v316 = vunpack.c.l.b16 %v244
      %v317 = vunpack.c.l.b16 %v245
      %v318 = vunpack.c.l.b16 %v246
      %v319 = vunpack.c.l.b16 %v247
      %v320 = vunpack.c.l.b16 %v248
      %v321 = vunpack.c.l.b16 %v249
      %v322 = vunpack.c.l.b16 %v250
      %v323 = vunpack.c.l.b16 %v251
      %v324 = vunpack.c.l.b16 %v252
      %v325 = vunpack.c.l.b16 %v253
      %v326 = vpack.c.b16 %v295, %v294
      %v327 = vpack.c.b16 %v297, %v296
      %v328 = vpack.c.b16 %v299, %v298
      %v329 = vpack.c.b16 %v301, %v300
      %v330 = vpack.c.b16 %v303, %v302
      %v331 = vpack.c.b16 %v305, %v304
      %v332 = vpack.c.b16 %v307, %v306
      %v333 = vpack.c.b16 %v309, %v308
      %v334 = vpack.c.b16 %v311, %v310
      %v335 = vpack.c.b16 %v313, %v312
      %v336 = vpack.c.b16 %v315, %v314
      %v337 = vpack.c.b16 %v317, %v316
      %v338 = vpack.c.b16 %v319, %v318
      %v339 = vpack.c.b16 %v321, %v320
      %v340 = vpack.c.b16 %v323, %v322
      %v341 = vpack.c.b16 %v325, %v324
      %358 = vmatprep.subr.bf16.mxu0 0
      %359 = vmatpush1.bf16.msra.mxu0 %v333
      %360 = vmatprep.subr.bf16.mxu0 0
      %361 = vmatpush1.bf16.msra.mxu0 %v332
      %362 = vmatprep.subr.bf16.mxu0 0
      %363 = vmatpush1.bf16.msra.mxu0 %v331
      %364 = vmatprep.subr.bf16.mxu0 0
      %365 = vmatpush1.bf16.msra.mxu0 %v330
      %366 = vmatprep.subr.bf16.mxu0 0
      %367 = vmatpush1.bf16.msra.mxu0 %v329
      %368 = vmatprep.subr.bf16.mxu0 0
      %369 = vmatpush1.bf16.msra.mxu0 %v328
      %370 = vmatprep.subr.bf16.mxu0 0
      %371 = vmatpush1.bf16.msra.mxu0 %v327
      %372 = vmatprep.subr.bf16.mxu0 0
      %373 = vmatpush1.bf16.msra.mxu0 %v326
      %374 = vmatprep.subr.bf16.mxu0 0
      %375 = vmatpush2.bf16.msra.mxu0 %v341
      %376 = vmatprep.subr.bf16.mxu0 0
      %377 = vmatpush2.bf16.msra.mxu0 %v340
      %378 = vmatprep.subr.bf16.mxu0 0
      %379 = vmatpush2.bf16.msra.mxu0 %v339
      %380 = vmatprep.subr.bf16.mxu0 0
      %381 = vmatpush2.bf16.msra.mxu0 %v338
      %382 = vmatprep.subr.bf16.mxu0 0
      %383 = vmatpush2.bf16.msra.mxu0 %v337
      %384 = vmatprep.subr.bf16.mxu0 0
      %385 = vmatpush2.bf16.msra.mxu0 %v336
      %386 = vmatprep.subr.bf16.mxu0 0
      %387 = vmatpush2.bf16.msra.mxu0 %v335
      %388 = vmatprep.subr.bf16.mxu0 0
      %389 = vmatpush2.bf16.msra.mxu0 %v334
      %390 = vmatprep.mubr.bf16.mxu0 %v259
      %391 = vmatmul.mubr.bf16.gmra.mxu0 %v258
      %v392 = vpop.f32.mrf.mxu0
      %v393 = vadd.f32 %v254, %v392
      %v394 = vpop.f32.mrf.mxu0
      %v395 = vpop.f32.mrf.mxu0
      %v396 = vpop.f32.mrf.mxu0
      %397 = vdwg.mxu0
      %vm398 = vcmask 258048
      %399 = vst.msk [vmem:[%s219] sm:$0x1f] %vm398, %v393
      %p400 = scmp.lt.s32.totalorder %s19, 1
      %s401 = scalar_select %p400, %s19, 1
      %p402 = scmp.lt.s32.totalorder %s18, 0
      %s403 = scalar_select %p402, %s18, 0
      %s404 = sadd.s32 %s403, %s401
      %s405 = smul.addr %s404, 8
      %s406 = scalar_lea.vmem %s3, %s405
      // Predicated region
      $region33: #{tpu_custom_call.1} parent=31 // pred_check
        %p407 = pneg %p121
      $region34: #{tpu_custom_call.1} parent=31 // pred_check_branch
        %409 = sbr.rel (%p407) target = $region36
      $region35: #{tpu_custom_call.1} parent=31 // pred_region
        _
      $region36: #{tpu_custom_call.1} parent=31 // pred_fallthru
        _
    $region32: #{tpu_custom_call.1} parent=5 // pred_fallthru
      _
    %p410 = scmp.le.s32.totalorder 2, %s9
    // Predicated region
    $region37: #{tpu_custom_call.1} parent=5 // pred_check
      %p411 = pneg %p410
    $region38: #{tpu_custom_call.1} parent=5 // pred_check_branch
      %413 = sbr.rel (%p411) target = $region40
    $region39: #{tpu_custom_call.1} parent=5 // pred_region
      %s414 = ssub.s32 %s9, 2
      // Predicated region
      $region41: #{tpu_custom_call.1} parent=39 // pred_check
        %p415 = pneg %p127
      $region42: #{tpu_custom_call.1} parent=39 // pred_check_branch
        %417 = sbr.rel (%p415) target = $region44
      $region43: #{tpu_custom_call.1} parent=39 // pred_region
        %p418 = scmp.lt.s32.totalorder %s21, 1
        %s419 = scalar_select %p418, %s21, 1
        %p420 = scmp.lt.s32.totalorder %s20, 0
        %s421 = scalar_select %p420, %s20, 0
        %s422 = sadd.s32 %s421, %s419
        %s423 = smul.addr %s422, 8
        %s424 = scalar_lea.vmem %s3, %s423
      $region44: #{tpu_custom_call.1} parent=39 // pred_fallthru
        _
    $region40: #{tpu_custom_call.1} parent=5 // pred_fallthru
      _
  $region6: #{tpu_custom_call.1} parent=0 // loop_footer
    %s13 = sadd.s32 1, %s9
  $region7: #{tpu_custom_call.1} parent=0 // loop_footer_branch
    %8 = sbr.rel target = $region3
  $region8: #{tpu_custom_call.1} parent=0 // loop_exit
    _

</llo_original>
